<compile_context>
chip_gen: v5e
topology: v5e:2x2
jax: 0.10.0
libtpu: 0.0.40
codegen_flags: <defaults>
</compile_context>

<pallas_src>
import jax
import jax.numpy as jnp
from jax.experimental import pallas as pl
from jax.experimental.pallas import tpu as pltpu

# ---- model hyperparameters (consistent with the PyTorch module) ----
B = 64            # sentences per call; grid of 2 blocks keeps both v7x TCs busy
L = 8             # sentence_length
D = 32            # input_dim (embedding / hidden dim)
VOCAB = 20        # len(vocab); embedding table has VOCAB + 1 rows
VOCAB_PAD = 32    # table rows zero-padded so the one-hot K dim is 8-aligned
NUM_CLASSES = 3
OUT_PAD = 128     # lane-padded classifier width (wrapper slices back to 3)
BLOCK_B = 32      # sentences per grid step -> matmul M dim = BLOCK_B*L = 256


def _model_kernel(ids_ref, w1f_ref, b1_ref, w2p_ref, b2p_ref, out_ref):
    """One grid step = BLOCK_B sentences.

        onehot = one_hot(ids)                       # (L*BLOCK_B, VOCAB_PAD), f32
        h      = sigmoid(onehot @ (emb @ W1) + b1)  # fused gather + Linear(D, D)
        pooled = max over the L sequence slabs      # MaxPool1d(sentence_length)
        out    = sigmoid(pooled @ W2p + b2p)        # Linear(D, 3), lane-padded
    """
    # --- one-hot gather: ids are sequence-major (row = l*BLOCK_B + b) ---
    ids = ids_ref[...]                                          # (L*BLOCK_B, 1)
    vocab_iota = jax.lax.broadcasted_iota(
        jnp.int32, (L * BLOCK_B, VOCAB_PAD), 1)
    onehot = (ids == vocab_iota).astype(jnp.float32)            # (L*BLOCK_B, 32)

    # --- fused Embedding + Linear(D, D) + sigmoid (single MXU matmul) ---
    # TODO(synk): nn.Dropout(0.4) train-mode stochastic masking is omitted
    # (identity in eval/inference mode).
    h = jnp.dot(onehot, w1f_ref[...],
                preferred_element_type=jnp.float32) + b1_ref[...]
    h = jax.nn.sigmoid(h)                                       # (L*BLOCK_B, D)

    # --- MaxPool1d over the sequence: 7 maxima over full (BLOCK_B, D) slabs ---
    pooled = h[0:BLOCK_B, :]
    for l in range(1, L):
        pooled = jnp.maximum(pooled, h[l * BLOCK_B:(l + 1) * BLOCK_B, :])

    # --- classifier: zero-padded to (D, 128) so the store is lane-dense ---
    logits = jnp.dot(pooled, w2p_ref[...],
                     preferred_element_type=jnp.float32) + b2p_ref[...]
    out_ref[...] = jax.nn.sigmoid(logits)                       # (BLOCK_B, 128)


def torch_model_forward(x_ids, emb_table, w1, b1, w2, b2):
    """x_ids: (batch, L) int32 token ids. Returns y_pred (batch, 3) float32."""
    batch = x_ids.shape[0]
    assert batch % BLOCK_B == 0, "batch must be a multiple of BLOCK_B"
    num_blocks = batch // BLOCK_B

    # --- one-time parameter prep (plain JAX, outside the kernel) ---
    # Fold Linear1 into the table:  emb[ids] @ W1  ==  onehot(ids) @ (emb @ W1).
    w1f = jnp.dot(emb_table, w1)                                # (VOCAB+1, D)
    w1f_pad = jnp.zeros((VOCAB_PAD, D), jnp.float32).at[:VOCAB + 1, :].set(w1f)
    b1_2d = b1.reshape(1, D).astype(jnp.float32)
    w2_pad = jnp.zeros((D, OUT_PAD), jnp.float32).at[:, :NUM_CLASSES].set(w2)
    b2_pad = jnp.zeros((1, OUT_PAD), jnp.float32).at[:, :NUM_CLASSES].set(
        b2.reshape(1, NUM_CLASSES))

    # Token ids reordered sequence-major inside each block (row = l*BLOCK_B + b)
    # and laid out as a column so the kernel needs no in-kernel transpose.
    ids_col = (x_ids.astype(jnp.int32)
               .reshape(num_blocks, BLOCK_B, L)
               .transpose(0, 2, 1)
               .reshape(num_blocks * L * BLOCK_B, 1))

    flops = batch * (2 * L * VOCAB_PAD * D + 2 * D * OUT_PAD)
    transcendentals = batch * (L * D + OUT_PAD)
    bytes_accessed = 4 * (ids_col.size + w1f_pad.size + b1_2d.size
                          + w2_pad.size + b2_pad.size + batch * OUT_PAD)

    out_padded = pl.pallas_call(
        _model_kernel,
        out_shape=jax.ShapeDtypeStruct((batch, OUT_PAD), jnp.float32),
        grid_spec=pltpu.PrefetchScalarGridSpec(
            num_scalar_prefetch=0,
            grid=(num_blocks,),
            in_specs=[
                pl.BlockSpec((L * BLOCK_B, 1), lambda i: (i, 0)),      # ids
                pl.BlockSpec((VOCAB_PAD, D), lambda i: (0, 0)),        # emb@W1
                pl.BlockSpec((1, D), lambda i: (0, 0)),                # b1
                pl.BlockSpec((D, OUT_PAD), lambda i: (0, 0)),          # W2 pad
                pl.BlockSpec((1, OUT_PAD), lambda i: (0, 0)),          # b2 pad
            ],
            out_specs=pl.BlockSpec((BLOCK_B, OUT_PAD), lambda i: (i, 0)),
        ),
        compiler_params=pltpu.CompilerParams(
            dimension_semantics=("parallel",)),   # shard batch blocks across TCs
        cost_estimate=pl.CostEstimate(
            flops=flops, transcendentals=transcendentals,
            bytes_accessed=bytes_accessed),
    )(ids_col, w1f_pad, b1_2d, w2_pad, b2_pad)

    return out_padded[:, :NUM_CLASSES]


if __name__ == "__main__":
    key = jax.random.PRNGKey(0)
    k_ids, k_emb, k_w1, k_b1, k_w2, k_b2 = jax.random.split(key, 6)

    # Deterministic synthetic parameters (shapes follow the nn.Module __init__).
    emb_table = jax.random.normal(k_emb, (VOCAB + 1, D), jnp.float32) * 0.1
    # nn.Linear stores (out, in); we keep (in, out) so the math is x @ W.
    w1 = jax.random.normal(k_w1, (D, D), jnp.float32) * 0.1
    b1 = jax.random.normal(k_b1, (D,), jnp.float32) * 0.1
    w2 = jax.random.normal(k_w2, (D, NUM_CLASSES), jnp.float32) * 0.1
    b2 = jax.random.normal(k_b2, (NUM_CLASSES,), jnp.float32) * 0.1

    x_ids = jax.random.randint(k_ids, (B, L), 0, VOCAB + 1, jnp.int32)

    # TODO(synk): the `y is not None` cross-entropy-loss branch is not
    # implemented; this kernel reproduces the inference path returning y_pred.
    fwd = jax.jit(torch_model_forward)
    y_pred = fwd(x_ids, emb_table, w1, b1, w2, b2)
    jax.block_until_ready(y_pred)

    # Pure-JAX reference check of the same math.
    ref_h = jax.nn.sigmoid(jnp.take(emb_table, x_ids, axis=0) @ w1 + b1)
    ref_pool = jnp.max(ref_h, axis=1)
    ref = jax.nn.sigmoid(ref_pool @ w2 + b2)
    assert y_pred.shape == (B, NUM_CLASSES)
    assert jnp.allclose(y_pred, ref, atol=1e-5), "mismatch vs reference"

    print("KERNEL_OK")
</pallas_src>

<mosaic_0001>
module attributes {stable_mosaic.version = 11 : i64} {
  func.func @_model_kernel(%arg0: i32, %arg1: memref<256x1xi32, #tpu.memory_space<vmem>>, %arg2: memref<32x32xf32, #tpu.memory_space<vmem>>, %arg3: memref<1x32xf32, #tpu.memory_space<vmem>>, %arg4: memref<32x128xf32, #tpu.memory_space<vmem>>, %arg5: memref<1x128xf32, #tpu.memory_space<vmem>>, %arg6: memref<32x128xf32, #tpu.memory_space<vmem>>) attributes {dimension_semantics = [#tpu.dimension_semantics<parallel>], iteration_bounds = array<i64: 2>, scalar_prefetch = 0 : i64, scratch_operands = 0 : i64, tpu.core_type = #tpu.core_type<tc>, window_params = [{transform_indices = @transform_0, window_bounds = array<i64: 256, 1>}, {pipeline_mode = #tpu.pipeline_mode<synchronous>, transform_indices = @transform_1, window_bounds = array<i64: 32, 32>}, {pipeline_mode = #tpu.pipeline_mode<synchronous>, transform_indices = @transform_2, window_bounds = array<i64: 1, 32>}, {pipeline_mode = #tpu.pipeline_mode<synchronous>, transform_indices = @transform_3, window_bounds = array<i64: 32, 128>}, {pipeline_mode = #tpu.pipeline_mode<synchronous>, transform_indices = @transform_4, window_bounds = array<i64: 1, 128>}, {transform_indices = @transform_5, window_bounds = array<i64: 32, 128>}]} {
    %c0 = arith.constant 0 : index
    %c0_0 = arith.constant 0 : index
    %0 = vector.load %arg1[%c0, %c0_0] : memref<256x1xi32, #tpu.memory_space<vmem>>, vector<256x1xi32>
    %1 = tpu.iota {dimensions = array<i32: 1>} : vector<256x32xi32>
    %2 = vector.broadcast %0 : vector<256x1xi32> to vector<256x32xi32>
    %3 = arith.cmpi eq, %2, %1 : vector<256x32xi32>
    %4 = arith.extui %3 : vector<256x32xi1> to vector<256x32xi32>
    %5 = arith.sitofp %4 : vector<256x32xi32> to vector<256x32xf32>
    %c0_1 = arith.constant 0 : index
    %c0_2 = arith.constant 0 : index
    %6 = vector.load %arg2[%c0_1, %c0_2] : memref<32x32xf32, #tpu.memory_space<vmem>>, vector<32x32xf32>
    %cst = arith.constant dense<0.000000e+00> : vector<256x32xf32>
    %7 = tpu.matmul %5, %6, %cst {dimension_numbers = #tpu.dot_dimension_numbers<[1], [0], [0], [1], [0, 0, 1, 1], [], []>} : vector<256x32xf32>, vector<32x32xf32>, vector<256x32xf32> -> vector<256x32xf32>
    %c0_3 = arith.constant 0 : index
    %c0_4 = arith.constant 0 : index
    %8 = vector.load %arg3[%c0_3, %c0_4] : memref<1x32xf32, #tpu.memory_space<vmem>>, vector<1x32xf32>
    %9 = vector.broadcast %8 : vector<1x32xf32> to vector<256x32xf32>
    %10 = arith.addf %7, %9 : vector<256x32xf32>
    %11 = arith.negf %10 : vector<256x32xf32>
    %12 = math.exp %11 : vector<256x32xf32>
    %cst_5 = arith.constant 1.000000e+00 : f32
    %13 = vector.broadcast %cst_5 : f32 to vector<256x32xf32>
    %14 = arith.addf %13, %12 : vector<256x32xf32>
    %15 = arith.divf %13, %14 : vector<256x32xf32>
    %16 = vector.extract_strided_slice %15 {offsets = [0, 0], sizes = [32, 32], strides = [1, 1]} : vector<256x32xf32> to vector<32x32xf32>
    %17 = vector.extract_strided_slice %15 {offsets = [32, 0], sizes = [32, 32], strides = [1, 1]} : vector<256x32xf32> to vector<32x32xf32>
    %18 = arith.maximumf %16, %17 : vector<32x32xf32>
    %19 = vector.extract_strided_slice %15 {offsets = [64, 0], sizes = [32, 32], strides = [1, 1]} : vector<256x32xf32> to vector<32x32xf32>
    %20 = arith.maximumf %18, %19 : vector<32x32xf32>
    %21 = vector.extract_strided_slice %15 {offsets = [96, 0], sizes = [32, 32], strides = [1, 1]} : vector<256x32xf32> to vector<32x32xf32>
    %22 = arith.maximumf %20, %21 : vector<32x32xf32>
    %23 = vector.extract_strided_slice %15 {offsets = [128, 0], sizes = [32, 32], strides = [1, 1]} : vector<256x32xf32> to vector<32x32xf32>
    %24 = arith.maximumf %22, %23 : vector<32x32xf32>
    %25 = vector.extract_strided_slice %15 {offsets = [160, 0], sizes = [32, 32], strides = [1, 1]} : vector<256x32xf32> to vector<32x32xf32>
    %26 = arith.maximumf %24, %25 : vector<32x32xf32>
    %27 = vector.extract_strided_slice %15 {offsets = [192, 0], sizes = [32, 32], strides = [1, 1]} : vector<256x32xf32> to vector<32x32xf32>
    %28 = arith.maximumf %26, %27 : vector<32x32xf32>
    %29 = vector.extract_strided_slice %15 {offsets = [224, 0], sizes = [32, 32], strides = [1, 1]} : vector<256x32xf32> to vector<32x32xf32>
    %30 = arith.maximumf %28, %29 : vector<32x32xf32>
    %c0_6 = arith.constant 0 : index
    %c0_7 = arith.constant 0 : index
    %31 = vector.load %arg4[%c0_6, %c0_7] : memref<32x128xf32, #tpu.memory_space<vmem>>, vector<32x128xf32>
    %cst_8 = arith.constant dense<0.000000e+00> : vector<32x128xf32>
    %32 = tpu.matmul %30, %31, %cst_8 {dimension_numbers = #tpu.dot_dimension_numbers<[1], [0], [0], [1], [0, 0, 1, 1], [], []>} : vector<32x32xf32>, vector<32x128xf32>, vector<32x128xf32> -> vector<32x128xf32>
    %c0_9 = arith.constant 0 : index
    %c0_10 = arith.constant 0 : index
    %33 = vector.load %arg5[%c0_9, %c0_10] : memref<1x128xf32, #tpu.memory_space<vmem>>, vector<1x128xf32>
    %34 = vector.broadcast %33 : vector<1x128xf32> to vector<32x128xf32>
    %35 = arith.addf %32, %34 : vector<32x128xf32>
    %36 = arith.negf %35 : vector<32x128xf32>
    %37 = math.exp %36 : vector<32x128xf32>
    %cst_11 = arith.constant 1.000000e+00 : f32
    %38 = vector.broadcast %cst_11 : f32 to vector<32x128xf32>
    %39 = arith.addf %38, %37 : vector<32x128xf32>
    %40 = arith.divf %38, %39 : vector<32x128xf32>
    %c0_12 = arith.constant 0 : index
    %c0_13 = arith.constant 0 : index
    %41 = vector.load %arg6[%c0_12, %c0_13] : memref<32x128xf32, #tpu.memory_space<vmem>>, vector<32x128xf32>
    tpu.vector_store %arg6[%c0_12, %c0_13], %40 {strides = array<i32>} : memref<32x128xf32, #tpu.memory_space<vmem>>, vector<32x128xf32>,
    return
  }
  func.func @transform_0(%arg0: i32) -> (i32, i32) {
    %c0_i32 = arith.constant 0 : i32
    %c0_i32_0 = arith.constant 0 : i32
    return %arg0, %c0_i32 : i32, i32
  }
  func.func @transform_1(%arg0: i32) -> (i32, i32) {
    %c0_i32 = arith.constant 0 : i32
    %c0_i32_0 = arith.constant 0 : i32
    %c0_i32_1 = arith.constant 0 : i32
    return %c0_i32, %c0_i32_0 : i32, i32
  }
  func.func @transform_2(%arg0: i32) -> (i32, i32) {
    %c0_i32 = arith.constant 0 : i32
    %c0_i32_0 = arith.constant 0 : i32
    %c0_i32_1 = arith.constant 0 : i32
    return %c0_i32, %c0_i32_0 : i32, i32
  }
  func.func @transform_3(%arg0: i32) -> (i32, i32) {
    %c0_i32 = arith.constant 0 : i32
    %c0_i32_0 = arith.constant 0 : i32
    %c0_i32_1 = arith.constant 0 : i32
    return %c0_i32, %c0_i32_0 : i32, i32
  }
  func.func @transform_4(%arg0: i32) -> (i32, i32) {
    %c0_i32 = arith.constant 0 : i32
    %c0_i32_0 = arith.constant 0 : i32
    %c0_i32_1 = arith.constant 0 : i32
    return %c0_i32, %c0_i32_0 : i32, i32
  }
  func.func @transform_5(%arg0: i32) -> (i32, i32) {
    %c0_i32 = arith.constant 0 : i32
    %c0_i32_0 = arith.constant 0 : i32
    return %arg0, %c0_i32 : i32, i32
  }
}

</mosaic_0001>

<llo_original>
// kernel: torch_model_forward.1
$region0: #{torch_model_forward.1}
  #allocation0 [shape = 'u32[]', space=smem, size = 0x4, offset = 0x4, fixed_abs, tag = 'smem constant byte address 0x4 - core index']
  #allocation1 [shape = 'u32[72,128]{1,0:T(1,128)}', space=vmem, size = 0x9000, scoped, tag = 'internal scratch']
  %s0 = inlined_call_operand.vmem [shape: s32[512,1], index: 0, kind: input, shape index: {}]
  %s1 = inlined_call_operand.vmem [shape: f32[32,32], index: 1, kind: input, shape index: {}]
  %s2 = inlined_call_operand.vmem [shape: f32[1,32], index: 2, kind: input, shape index: {}]
  %s3 = inlined_call_operand.vmem [shape: f32[32,128], index: 3, kind: input, shape index: {}]
  %s4 = inlined_call_operand.vmem [shape: f32[1,128], index: 4, kind: input, shape index: {}]
  %s5 = inlined_call_operand.vmem [shape: f32[64,128], index: 5, kind: output, shape index: {}]
  %s6 = sld [smem:[#allocation0]]
  $region53: #{torch_model_forward.1} parent=0
    _
  %s8 = ssub.s32 1, %s6
  %s9 = scalar_select 0, %s8, %s6
  loop: start=0, step=1, limit=4
  $region2: #{torch_model_forward.1} parent=0 // loop_pre_header
    _
  $region3: #{torch_model_forward.1} parent=0 // loop_header
    %s11 = sphi 0, %s15
    %p12 = scmp.ge.s32.totalorder %s11, 4
    %s21 = sphi 0, %s23
    %s24 = sphi 0, %s21
    %s25 = sphi 0, %s24
    %s41 = sphi 0, %s25
    %s45 = sphi 0, %s45
    %s47 = sphi 0, %s45
    %s48 = sphi 0, %s47
    %s62 = sphi 0, %s48
    %s66 = sphi 0, %s66
    %s68 = sphi 0, %s66
    %s69 = sphi 0, %s68
    %s83 = sphi 0, %s69
    %s87 = sphi 0, %s87
    %s89 = sphi 0, %s87
    %s90 = sphi 0, %s89
    %s104 = sphi 0, %s90
    %s108 = sphi 0, %s108
    %s110 = sphi 0, %s108
    %s111 = sphi 0, %s110
    %s125 = sphi 0, %s111
    %s131 = sphi 0, %s133
    %s134 = sphi 0, %s131
    %s135 = sphi 0, %s134
    %s151 = sphi 0, %s135
  $region4: #{torch_model_forward.1} parent=0 // loop_header_branch
    %14 = sbr.rel (%p12) target = $region8
  $region5: #{torch_model_forward.1} parent=0 // loop_body
    %s16 = ssub.s32 %s11, 1
    %s17 = ssub.s32 %s11, 2
    %s18 = sadd.s32 %s11, 1
    %s19 = ssub.s32 %s11, %s18
    %p20 = scmp.eq.s32.totalorder %s19, 0
    %s22 = sadd.s32 %s21, 1
    %s23 = scalar_select %p20, %s21, %s22
    %p26 = pneg %p20
    %p27 = scmp.eq.s32.totalorder %s11, 1
    %p28 = por %p26, %p27
    %p29 = scmp.ne.s32.totalorder %s21, %s24
    %p30 = scmp.eq.s32.totalorder %s11, 0
    %p31 = por %p29, %p30
    %p32 = scmp.ne.s32.totalorder %s21, %s24
    %p33 = scmp.eq.s32.totalorder %s16, 1
    %p34 = por %p32, %p33
    %p35 = scmp.ne.s32.totalorder %s24, %s25
    %p36 = scmp.eq.s32.totalorder %s16, 0
    %p37 = por %p35, %p36
    %p38 = scmp.ne.s32.totalorder %s24, %s25
    %p39 = scmp.eq.s32.totalorder %s17, 1
    %p40 = por %p38, %p39
    %p42 = scmp.ne.s32.totalorder %s25, %s41
    %p43 = scmp.eq.s32.totalorder %s17, 0
    %p44 = por %p42, %p43
    %s46 = sadd.s32 %s45, 1
    %p49 = scmp.eq.s32.totalorder %s11, 1
    %p50 = scmp.ne.s32.totalorder %s45, %s47
    %p51 = scmp.eq.s32.totalorder %s11, 0
    %p52 = por %p50, %p51
    %p53 = scmp.ne.s32.totalorder %s45, %s47
    %p54 = scmp.eq.s32.totalorder %s16, 1
    %p55 = por %p53, %p54
    %p56 = scmp.ne.s32.totalorder %s47, %s48
    %p57 = scmp.eq.s32.totalorder %s16, 0
    %p58 = por %p56, %p57
    %p59 = scmp.ne.s32.totalorder %s47, %s48
    %p60 = scmp.eq.s32.totalorder %s17, 1
    %p61 = por %p59, %p60
    %p63 = scmp.ne.s32.totalorder %s48, %s62
    %p64 = scmp.eq.s32.totalorder %s17, 0
    %p65 = por %p63, %p64
    %s67 = sadd.s32 %s66, 1
    %p70 = scmp.eq.s32.totalorder %s11, 1
    %p71 = scmp.ne.s32.totalorder %s66, %s68
    %p72 = scmp.eq.s32.totalorder %s11, 0
    %p73 = por %p71, %p72
    %p74 = scmp.ne.s32.totalorder %s66, %s68
    %p75 = scmp.eq.s32.totalorder %s16, 1
    %p76 = por %p74, %p75
    %p77 = scmp.ne.s32.totalorder %s68, %s69
    %p78 = scmp.eq.s32.totalorder %s16, 0
    %p79 = por %p77, %p78
    %p80 = scmp.ne.s32.totalorder %s68, %s69
    %p81 = scmp.eq.s32.totalorder %s17, 1
    %p82 = por %p80, %p81
    %p84 = scmp.ne.s32.totalorder %s69, %s83
    %p85 = scmp.eq.s32.totalorder %s17, 0
    %p86 = por %p84, %p85
    %s88 = sadd.s32 %s87, 1
    %p91 = scmp.eq.s32.totalorder %s11, 1
    %p92 = scmp.ne.s32.totalorder %s87, %s89
    %p93 = scmp.eq.s32.totalorder %s11, 0
    %p94 = por %p92, %p93
    %p95 = scmp.ne.s32.totalorder %s87, %s89
    %p96 = scmp.eq.s32.totalorder %s16, 1
    %p97 = por %p95, %p96
    %p98 = scmp.ne.s32.totalorder %s89, %s90
    %p99 = scmp.eq.s32.totalorder %s16, 0
    %p100 = por %p98, %p99
    %p101 = scmp.ne.s32.totalorder %s89, %s90
    %p102 = scmp.eq.s32.totalorder %s17, 1
    %p103 = por %p101, %p102
    %p105 = scmp.ne.s32.totalorder %s90, %s104
    %p106 = scmp.eq.s32.totalorder %s17, 0
    %p107 = por %p105, %p106
    %s109 = sadd.s32 %s108, 1
    %p112 = scmp.eq.s32.totalorder %s11, 1
    %p113 = scmp.ne.s32.totalorder %s108, %s110
    %p114 = scmp.eq.s32.totalorder %s11, 0
    %p115 = por %p113, %p114
    %p116 = scmp.ne.s32.totalorder %s108, %s110
    %p117 = scmp.eq.s32.totalorder %s16, 1
    %p118 = por %p116, %p117
    %p119 = scmp.ne.s32.totalorder %s110, %s111
    %p120 = scmp.eq.s32.totalorder %s16, 0
    %p121 = por %p119, %p120
    %p122 = scmp.ne.s32.totalorder %s110, %s111
    %p123 = scmp.eq.s32.totalorder %s17, 1
    %p124 = por %p122, %p123
    %p126 = scmp.ne.s32.totalorder %s111, %s125
    %p127 = scmp.eq.s32.totalorder %s17, 0
    %p128 = por %p126, %p127
    %s129 = ssub.s32 %s11, %s18
    %p130 = scmp.eq.s32.totalorder %s129, 0
    %s132 = sadd.s32 %s131, 1
    %s133 = scalar_select %p130, %s131, %s132
    %p136 = pneg %p130
    %p137 = scmp.eq.s32.totalorder %s11, 1
    %p138 = por %p136, %p137
    %p139 = scmp.ne.s32.totalorder %s131, %s134
    %p140 = scmp.eq.s32.totalorder %s11, 0
    %p141 = por %p139, %p140
    %p142 = scmp.ne.s32.totalorder %s131, %s134
    %p143 = scmp.eq.s32.totalorder %s16, 1
    %p144 = por %p142, %p143
    %p145 = scmp.ne.s32.totalorder %s134, %s135
    %p146 = scmp.eq.s32.totalorder %s16, 0
    %p147 = por %p145, %p146
    %p148 = scmp.ne.s32.totalorder %s134, %s135
    %p149 = scmp.eq.s32.totalorder %s17, 1
    %p150 = por %p148, %p149
    %p152 = scmp.ne.s32.totalorder %s135, %s151
    %p153 = scmp.eq.s32.totalorder %s17, 0
    %p154 = por %p152, %p153
    %p155 = scmp.le.s32.totalorder 1, %s11
    %p156 = scmp.lt.s32.totalorder %s11, 3
    %p157 = pnand %p155, %p156
    %p158 = pneg %p157
    // Predicated region
    $region9: #{torch_model_forward.1} parent=5 // pred_check
      _
    $region10: #{torch_model_forward.1} parent=5 // pred_check_branch
      %160 = sbr.rel (%p157) target = $region12
    $region11: #{torch_model_forward.1} parent=5 // pred_region
      %s161 = ssub.s32 %s11, 1
      // Predicated region
      $region13: #{torch_model_forward.1} parent=11 // pred_check
        %p162 = pneg %p58
      $region14: #{torch_model_forward.1} parent=11 // pred_check_branch
        %164 = sbr.rel (%p162) target = $region16
      $region15: #{torch_model_forward.1} parent=11 // pred_region
        _
      $region16: #{torch_model_forward.1} parent=11 // pred_fallthru
        _
      // Predicated region
      $region17: #{torch_model_forward.1} parent=11 // pred_check
        %p165 = pneg %p79
      $region18: #{torch_model_forward.1} parent=11 // pred_check_branch
        %167 = sbr.rel (%p165) target = $region20
      $region19: #{torch_model_forward.1} parent=11 // pred_region
        _
      $region20: #{torch_model_forward.1} parent=11 // pred_fallthru
        _
      // Predicated region
      $region21: #{torch_model_forward.1} parent=11 // pred_check
        %p168 = pneg %p100
      $region22: #{torch_model_forward.1} parent=11 // pred_check_branch
        %170 = sbr.rel (%p168) target = $region24
      $region23: #{torch_model_forward.1} parent=11 // pred_region
        _
      $region24: #{torch_model_forward.1} parent=11 // pred_fallthru
        _
      // Predicated region
      $region25: #{torch_model_forward.1} parent=11 // pred_check
        %p171 = pneg %p121
      $region26: #{torch_model_forward.1} parent=11 // pred_check_branch
        %173 = sbr.rel (%p171) target = $region28
      $region27: #{torch_model_forward.1} parent=11 // pred_region
        _
      $region28: #{torch_model_forward.1} parent=11 // pred_fallthru
        _
    $region12: #{torch_model_forward.1} parent=5 // pred_fallthru
      _
    %p174 = scmp.lt.s32.totalorder %s11, 2
    // Predicated region
    $region29: #{torch_model_forward.1} parent=5 // pred_check
      %p175 = pneg %p174
    $region30: #{torch_model_forward.1} parent=5 // pred_check_branch
      %177 = sbr.rel (%p175) target = $region32
    $region31: #{torch_model_forward.1} parent=5 // pred_region
      // Predicated region
      $region33: #{torch_model_forward.1} parent=31 // pred_check
        %p178 = pneg %p31
      $region34: #{torch_model_forward.1} parent=31 // pred_check_branch
        %180 = sbr.rel (%p178) target = $region36
      $region35: #{torch_model_forward.1} parent=31 // pred_region
        %s181 = smul.u32 32, %s11
        %p182 = scmp.lt.s32.totalorder %s181, 63
        %s183 = scalar_select %p182, %s181, 63
        %s184 = smul.addr %s183, 8
        %s185 = scalar_lea.vmem %s0, %s184
        %s186 = smul.u32 32, %s11
      $region36: #{torch_model_forward.1} parent=31 // pred_fallthru
        _
    $region32: #{torch_model_forward.1} parent=5 // pred_fallthru
      _
    %p187 = scmp.le.s32.totalorder 1, %s11
    %p188 = scmp.lt.s32.totalorder %s11, 3
    %p189 = pnand %p187, %p188
    %p190 = pneg %p189
    // Predicated region
    $region37: #{torch_model_forward.1} parent=5 // pred_check
      _
    $region38: #{torch_model_forward.1} parent=5 // pred_check_branch
      %192 = sbr.rel (%p189) target = $region40
    $region39: #{torch_model_forward.1} parent=5 // pred_region
      %s193 = ssub.s32 %s11, 1
      %s194 = smul.u32 32, %s16
      %p195 = scmp.lt.s32.totalorder %s194, 63
      %s196 = scalar_select %p195, %s194, 63
      %s197 = smul.addr %s196, 8
      %s198 = scalar_lea.vmem %s0, %s197
      %p199 = pneg %p37
      %p200 = pneg %p34
      %p201 = pneg %p58
      %p202 = pneg %p55
      %p203 = pneg %p79
      %p204 = pneg %p76
      %p205 = pneg %p100
      %p206 = pneg %p97
      %p207 = pneg %p121
      %p208 = pneg %p118
      %p209 = pneg %p147
      %p210 = pneg %p144
      %s211 = smul.u32 4, %s16
      %p212 = scmp.lt.s32.totalorder %s211, 7
      %s213 = scalar_select %p212, %s211, 7
      %s214 = smul.addr %s213, 8
      %s215 = scalar_lea.vmem %s5, %s214
      %s216 = smul.u32 32, %s16
      %p217 = scmp.lt.s32.totalorder %s216, 63
      %s218 = scalar_select %p217, %s216, 63
      %s219 = smul.addr %s218, 8
      %s220 = scalar_lea.vmem %s0, %s219
      %s221 = smul.u32 32, %s16
      %s222 = smul.u32 4, %s16
      %p223 = scmp.lt.s32.totalorder %s222, 7
      %s224 = scalar_select %p223, %s222, 7
      %s225 = smul.addr %s224, 8
      %s226 = scalar_lea.vmem %s5, %s225
      %s227 = smul.u32 4, %s16
      %v228 = vld [vmem:[%s220] sm:$0xff]
      %v229 = vld [vmem:[%s220 + $0x8] sm:$0xff]
      %v230 = vld [vmem:[%s220 + $0x10] sm:$0xff]
      %v231 = vld [vmem:[%s220 + $0x18] sm:$0xff]
      %v232 = vld [vmem:[%s220 + $0x20] sm:$0xff]
      %v233 = vld [vmem:[%s220 + $0x28] sm:$0xff]
      %v234 = vld [vmem:[%s220 + $0x30] sm:$0xff]
      %v235 = vld [vmem:[%s220 + $0x38] sm:$0xff]
      %v236 = vld [vmem:[%s220 + $0x40] sm:$0xff]
      %v237 = vld [vmem:[%s220 + $0x48] sm:$0xff]
      %v238 = vld [vmem:[%s220 + $0x50] sm:$0xff]
      %v239 = vld [vmem:[%s220 + $0x58] sm:$0xff]
      %v240 = vld [vmem:[%s220 + $0x60] sm:$0xff]
      %v241 = vld [vmem:[%s220 + $0x68] sm:$0xff]
      %v242 = vld [vmem:[%s220 + $0x70] sm:$0xff]
      %v243 = vld [vmem:[%s220 + $0x78] sm:$0xff]
      %v244 = vld [vmem:[%s220 + $0x80] sm:$0xff]
      %v245 = vld [vmem:[%s220 + $0x88] sm:$0xff]
      %v246 = vld [vmem:[%s220 + $0x90] sm:$0xff]
      %v247 = vld [vmem:[%s220 + $0x98] sm:$0xff]
      %v248 = vld [vmem:[%s220 + $0xa0] sm:$0xff]
      %v249 = vld [vmem:[%s220 + $0xa8] sm:$0xff]
      %v250 = vld [vmem:[%s220 + $0xb0] sm:$0xff]
      %v251 = vld [vmem:[%s220 + $0xb8] sm:$0xff]
      %v252 = vld [vmem:[%s220 + $0xc0] sm:$0xff]
      %v253 = vld [vmem:[%s220 + $0xc8] sm:$0xff]
      %v254 = vld [vmem:[%s220 + $0xd0] sm:$0xff]
      %v255 = vld [vmem:[%s220 + $0xd8] sm:$0xff]
      %v256 = vld [vmem:[%s220 + $0xe0] sm:$0xff]
      %v257 = vld [vmem:[%s220 + $0xe8] sm:$0xff]
      %v258 = vld [vmem:[%s220 + $0xf0] sm:$0xff]
      %v259 = vld [vmem:[%s220 + $0xf8] sm:$0xff]
      %v260 = vlaneseq
      %v261 = vand.u32 %v260, 127
      %262 = vset.pattern.permute.xlu0 0
      %263 = vperm.xlu0 %262, %v228
      %v264 = vpop.permute.xlu0 %263
      %265 = vset.pattern.permute.xlu0 0
      %266 = vperm.xlu0 %265, %v229
      %v267 = vpop.permute.xlu0 %266
      %268 = vset.pattern.permute.xlu0 0
      %269 = vperm.xlu0 %268, %v230
      %v270 = vpop.permute.xlu0 %269
      %271 = vset.pattern.permute.xlu0 0
      %272 = vperm.xlu0 %271, %v231
      %v273 = vpop.permute.xlu0 %272
      %274 = vset.pattern.permute.xlu0 0
      %275 = vperm.xlu0 %274, %v232
      %v276 = vpop.permute.xlu0 %275
      %277 = vset.pattern.permute.xlu0 0
      %278 = vperm.xlu0 %277, %v233
      %v279 = vpop.permute.xlu0 %278
      %280 = vset.pattern.permute.xlu0 0
      %281 = vperm.xlu0 %280, %v234
      %v282 = vpop.permute.xlu0 %281
      %283 = vset.pattern.permute.xlu0 0
      %284 = vperm.xlu0 %283, %v235
      %v285 = vpop.permute.xlu0 %284
      %286 = vset.pattern.permute.xlu0 0
      %287 = vperm.xlu0 %286, %v236
      %v288 = vpop.permute.xlu0 %287
      %289 = vset.pattern.permute.xlu0 0
      %290 = vperm.xlu0 %289, %v237
      %v291 = vpop.permute.xlu0 %290
      %292 = vset.pattern.permute.xlu0 0
      %293 = vperm.xlu0 %292, %v238
      %v294 = vpop.permute.xlu0 %293
      %295 = vset.pattern.permute.xlu0 0
      %296 = vperm.xlu0 %295, %v239
      %v297 = vpop.permute.xlu0 %296
      %298 = vset.pattern.permute.xlu0 0
      %299 = vperm.xlu0 %298, %v240
      %v300 = vpop.permute.xlu0 %299
      %301 = vset.pattern.permute.xlu0 0
      %302 = vperm.xlu0 %301, %v241
      %v303 = vpop.permute.xlu0 %302
      %304 = vset.pattern.permute.xlu0 0
      %305 = vperm.xlu0 %304, %v242
      %v306 = vpop.permute.xlu0 %305
      %307 = vset.pattern.permute.xlu0 0
      %308 = vperm.xlu0 %307, %v243
      %v309 = vpop.permute.xlu0 %308
      %310 = vset.pattern.permute.xlu0 0
      %311 = vperm.xlu0 %310, %v244
      %v312 = vpop.permute.xlu0 %311
      %313 = vset.pattern.permute.xlu0 0
      %314 = vperm.xlu0 %313, %v245
      %v315 = vpop.permute.xlu0 %314
      %316 = vset.pattern.permute.xlu0 0
      %317 = vperm.xlu0 %316, %v246
      %v318 = vpop.permute.xlu0 %317
      %319 = vset.pattern.permute.xlu0 0
      %320 = vperm.xlu0 %319, %v247
      %v321 = vpop.permute.xlu0 %320
      %322 = vset.pattern.permute.xlu0 0
      %323 = vperm.xlu0 %322, %v248
      %v324 = vpop.permute.xlu0 %323
      %325 = vset.pattern.permute.xlu0 0
      %326 = vperm.xlu0 %325, %v249
      %v327 = vpop.permute.xlu0 %326
      %328 = vset.pattern.permute.xlu0 0
      %329 = vperm.xlu0 %328, %v250
      %v330 = vpop.permute.xlu0 %329
      %331 = vset.pattern.permute.xlu0 0
      %332 = vperm.xlu0 %331, %v251
      %v333 = vpop.permute.xlu0 %332
      %334 = vset.pattern.permute.xlu0 0
      %335 = vperm.xlu0 %334, %v252
      %v336 = vpop.permute.xlu0 %335
      %337 = vset.pattern.permute.xlu0 0
      %338 = vperm.xlu0 %337, %v253
      %v339 = vpop.permute.xlu0 %338
      %340 = vset.pattern.permute.xlu0 0
      %341 = vperm.xlu0 %340, %v254
      %v342 = vpop.permute.xlu0 %341
      %343 = vset.pattern.permute.xlu0 0
      %344 = vperm.xlu0 %343, %v255
      %v345 = vpop.permute.xlu0 %344
      %346 = vset.pattern.permute.xlu0 0
      %347 = vperm.xlu0 %346, %v256
      %v348 = vpop.permute.xlu0 %347
      %349 = vset.pattern.permute.xlu0 0
      %350 = vperm.xlu0 %349, %v257
      %v351 = vpop.permute.xlu0 %350
      %352 = vset.pattern.permute.xlu0 0
      %353 = vperm.xlu0 %352, %v258
      %v354 = vpop.permute.xlu0 %353
      %355 = vset.pattern.permute.xlu0 0
      %356 = vperm.xlu0 %355, %v259
      %v357 = vpop.permute.xlu0 %356
      %vm358 = vcmp.eq.s32.totalorder %v264, %v261
      %vm359 = vcmp.eq.s32.totalorder %v267, %v261
      %vm360 = vcmp.eq.s32.totalorder %v270, %v261
      %vm361 = vcmp.eq.s32.totalorder %v273, %v261
      %vm362 = vcmp.eq.s32.totalorder %v276, %v261
      %vm363 = vcmp.eq.s32.totalorder %v279, %v261
      %vm364 = vcmp.eq.s32.totalorder %v282, %v261
      %vm365 = vcmp.eq.s32.totalorder %v285, %v261
      %vm366 = vcmp.eq.s32.totalorder %v288, %v261
      %vm367 = vcmp.eq.s32.totalorder %v291, %v261
      %vm368 = vcmp.eq.s32.totalorder %v294, %v261
      %vm369 = vcmp.eq.s32.totalorder %v297, %v261
      %vm370 = vcmp.eq.s32.totalorder %v300, %v261
      %vm371 = vcmp.eq.s32.totalorder %v303, %v261
      %vm372 = vcmp.eq.s32.totalorder %v306, %v261
      %vm373 = vcmp.eq.s32.totalorder %v309, %v261
      %vm374 = vcmp.eq.s32.totalorder %v312, %v261
      %vm375 = vcmp.eq.s32.totalorder %v315, %v261
      %vm376 = vcmp.eq.s32.totalorder %v318, %v261
      %vm377 = vcmp.eq.s32.totalorder %v321, %v261
      %vm378 = vcmp.eq.s32.totalorder %v324, %v261
      %vm379 = vcmp.eq.s32.totalorder %v327, %v261
      %vm380 = vcmp.eq.s32.totalorder %v330, %v261
      %vm381 = vcmp.eq.s32.totalorder %v333, %v261
      %vm382 = vcmp.eq.s32.totalorder %v336, %v261
      %vm383 = vcmp.eq.s32.totalorder %v339, %v261
      %vm384 = vcmp.eq.s32.totalorder %v342, %v261
      %vm385 = vcmp.eq.s32.totalorder %v345, %v261
      %vm386 = vcmp.eq.s32.totalorder %v348, %v261
      %vm387 = vcmp.eq.s32.totalorder %v351, %v261
      %vm388 = vcmp.eq.s32.totalorder %v354, %v261
      %vm389 = vcmp.eq.s32.totalorder %v357, %v261
      %v390 = vsel %vm358, 1, 0
      %v391 = vsel %vm359, 1, 0
      %v392 = vsel %vm360, 1, 0
      %v393 = vsel %vm361, 1, 0
      %v394 = vsel %vm362, 1, 0
      %v395 = vsel %vm363, 1, 0
      %v396 = vsel %vm364, 1, 0
      %v397 = vsel %vm365, 1, 0
      %v398 = vsel %vm366, 1, 0
      %v399 = vsel %vm367, 1, 0
      %v400 = vsel %vm368, 1, 0
      %v401 = vsel %vm369, 1, 0
      %v402 = vsel %vm370, 1, 0
      %v403 = vsel %vm371, 1, 0
      %v404 = vsel %vm372, 1, 0
      %v405 = vsel %vm373, 1, 0
      %v406 = vsel %vm374, 1, 0
      %v407 = vsel %vm375, 1, 0
      %v408 = vsel %vm376, 1, 0
      %v409 = vsel %vm377, 1, 0
      %v410 = vsel %vm378, 1, 0
      %v411 = vsel %vm379, 1, 0
      %v412 = vsel %vm380, 1, 0
      %v413 = vsel %vm381, 1, 0
      %v414 = vsel %vm382, 1, 0
      %v415 = vsel %vm383, 1, 0
      %v416 = vsel %vm384, 1, 0
      %v417 = vsel %vm385, 1, 0
      %v418 = vsel %vm386, 1, 0
      %v419 = vsel %vm387, 1, 0
      %v420 = vsel %vm388, 1, 0
      %v421 = vsel %vm389, 1, 0
      %v422 = vcvt.s32.f32 %v390
      %v423 = vcvt.s32.f32 %v391
      %v424 = vcvt.s32.f32 %v392
      %v425 = vcvt.s32.f32 %v393
      %v426 = vcvt.s32.f32 %v394
      %v427 = vcvt.s32.f32 %v395
      %v428 = vcvt.s32.f32 %v396
      %v429 = vcvt.s32.f32 %v397
      %v430 = vcvt.s32.f32 %v398
      %v431 = vcvt.s32.f32 %v399
      %v432 = vcvt.s32.f32 %v400
      %v433 = vcvt.s32.f32 %v401
      %v434 = vcvt.s32.f32 %v402
      %v435 = vcvt.s32.f32 %v403
      %v436 = vcvt.s32.f32 %v404
      %v437 = vcvt.s32.f32 %v405
      %v438 = vcvt.s32.f32 %v406
      %v439 = vcvt.s32.f32 %v407
      %v440 = vcvt.s32.f32 %v408
      %v441 = vcvt.s32.f32 %v409
      %v442 = vcvt.s32.f32 %v410
      %v443 = vcvt.s32.f32 %v411
      %v444 = vcvt.s32.f32 %v412
      %v445 = vcvt.s32.f32 %v413
      %v446 = vcvt.s32.f32 %v414
      %v447 = vcvt.s32.f32 %v415
      %v448 = vcvt.s32.f32 %v416
      %v449 = vcvt.s32.f32 %v417
      %v450 = vcvt.s32.f32 %v418
      %v451 = vcvt.s32.f32 %v419
      %v452 = vcvt.s32.f32 %v420
      %v453 = vcvt.s32.f32 %v421
      %v454 = vld [vmem:[%s1] sm:$0xff]
      %v455 = vld [vmem:[%s1 + $0x8] sm:$0xff]
      %v456 = vld [vmem:[%s1 + $0x10] sm:$0xff]
      %v457 = vld [vmem:[%s1 + $0x18] sm:$0xff]
      %v458 = vld [vmem:[%s2] sm:$0x1]
      %v460 = vperm.slane %v458, 0
      %vm462 = vcmask 261120
      %v464 = vsel %vm462, %v422, 0
      %v467 = vsel %vm462, %v423, 0
      %v470 = vsel %vm462, %v424, 0
      %v473 = vsel %vm462, %v425, 0
      %v476 = vsel %vm462, %v426, 0
      %v479 = vsel %vm462, %v427, 0
      %v482 = vsel %vm462, %v428, 0
      %v485 = vsel %vm462, %v429, 0
      %v488 = vsel %vm462, %v430, 0
      %v491 = vsel %vm462, %v431, 0
      %v494 = vsel %vm462, %v432, 0
      %v497 = vsel %vm462, %v433, 0
      %v500 = vsel %vm462, %v434, 0
      %v503 = vsel %vm462, %v435, 0
      %v506 = vsel %vm462, %v436, 0
      %v509 = vsel %vm462, %v437, 0
      %v512 = vsel %vm462, %v438, 0
      %v515 = vsel %vm462, %v439, 0
      %v518 = vsel %vm462, %v440, 0
      %v521 = vsel %vm462, %v441, 0
      %v524 = vsel %vm462, %v442, 0
      %v527 = vsel %vm462, %v443, 0
      %v530 = vsel %vm462, %v444, 0
      %v533 = vsel %vm462, %v445, 0
      %v536 = vsel %vm462, %v446, 0
      %v539 = vsel %vm462, %v447, 0
      %v542 = vsel %vm462, %v448, 0
      %v545 = vsel %vm462, %v449, 0
      %v548 = vsel %vm462, %v450, 0
      %v551 = vsel %vm462, %v451, 0
      %v554 = vsel %vm462, %v452, 0
      %v557 = vsel %vm462, %v453, 0
      %559 = vmatpush.msra.mxu0 0.0
      %560 = vmatpush.msra.mxu0 0.0
      %561 = vmatpush.msra.mxu0 0.0
      %562 = vmatpush.msra.mxu0 0.0
      %563 = vmatpush.msra.mxu0 0.0
      %564 = vmatpush.msra.mxu0 0.0
      %565 = vmatpush.msra.mxu0 0.0
      %566 = vmatpush.msra.mxu0 0.0
      %567 = vmatpush.msra.mxu0 0.0
      %568 = vmatpush.msra.mxu0 0.0
      %569 = vmatpush.msra.mxu0 0.0
      %570 = vmatpush.msra.mxu0 0.0
      %571 = vmatpush.msra.mxu0 %v457
      %572 = vmatpush.msra.mxu0 %v456
      %573 = vmatpush.msra.mxu0 %v455
      %574 = vmatpush.msra.mxu0 %v454
      %575 = vmatmul.f32.gmra.mxu0 %v464
      %v576 = vpop.f32.mrf.mxu0
      %v577 = vadd.f32 %v460, %v576
      %578 = vmatmul.f32.gmra.mxu0 %v467
      %v579 = vpop.f32.mrf.mxu0
      %v580 = vadd.f32 %v460, %v579
      %581 = vmatmul.f32.gmra.mxu0 %v470
      %v582 = vpop.f32.mrf.mxu0
      %v583 = vadd.f32 %v460, %v582
      %584 = vmatmul.f32.gmra.mxu0 %v473
      %v585 = vpop.f32.mrf.mxu0
      %v586 = vadd.f32 %v460, %v585
      %587 = vmatmul.f32.gmra.mxu0 %v476
      %v588 = vpop.f32.mrf.mxu0
      %v589 = vadd.f32 %v460, %v588
      %590 = vmatmul.f32.gmra.mxu0 %v479
      %v591 = vpop.f32.mrf.mxu0
      %v592 = vadd.f32 %v460, %v591
      %593 = vmatmul.f32.gmra.mxu0 %v482
      %v594 = vpop.f32.mrf.mxu0
      %v595 = vadd.f32 %v460, %v594
      %596 = vmatmul.f32.gmra.mxu0 %v485
      %v597 = vpop.f32.mrf.mxu0
      %v598 = vadd.f32 %v460, %v597
      %599 = vmatmul.f32.gmra.mxu0 %v488
      %v600 = vpop.f32.mrf.mxu0
      %v601 = vadd.f32 %v460, %v600
      %602 = vmatmul.f32.gmra.mxu0 %v491
      %v603 = vpop.f32.mrf.mxu0
      %v604 = vadd.f32 %v460, %v603
      %605 = vmatmul.f32.gmra.mxu0 %v494
      %v606 = vpop.f32.mrf.mxu0
      %v607 = vadd.f32 %v460, %v606
      %608 = vmatmul.f32.gmra.mxu0 %v497
      %v609 = vpop.f32.mrf.mxu0
      %v610 = vadd.f32 %v460, %v609
      %611 = vmatmul.f32.gmra.mxu0 %v500
      %v612 = vpop.f32.mrf.mxu0
      %v613 = vadd.f32 %v460, %v612
      %614 = vmatmul.f32.gmra.mxu0 %v503
      %v615 = vpop.f32.mrf.mxu0
      %v616 = vadd.f32 %v460, %v615
      %617 = vmatmul.f32.gmra.mxu0 %v506
      %v618 = vpop.f32.mrf.mxu0
      %v619 = vadd.f32 %v460, %v618
      %620 = vmatmul.f32.gmra.mxu0 %v509
      %v621 = vpop.f32.mrf.mxu0
      %v622 = vadd.f32 %v460, %v621
      %623 = vmatmul.f32.gmra.mxu0 %v512
      %v624 = vpop.f32.mrf.mxu0
      %v625 = vadd.f32 %v460, %v624
      %626 = vmatmul.f32.gmra.mxu0 %v515
      %v627 = vpop.f32.mrf.mxu0
      %v628 = vadd.f32 %v460, %v627
      %629 = vmatmul.f32.gmra.mxu0 %v518
      %v630 = vpop.f32.mrf.mxu0
      %v631 = vadd.f32 %v460, %v630
      %632 = vmatmul.f32.gmra.mxu0 %v521
      %v633 = vpop.f32.mrf.mxu0
      %v634 = vadd.f32 %v460, %v633
      %635 = vmatmul.f32.gmra.mxu0 %v524
      %v636 = vpop.f32.mrf.mxu0
      %v637 = vadd.f32 %v460, %v636
      %638 = vmatmul.f32.gmra.mxu0 %v527
      %v639 = vpop.f32.mrf.mxu0
      %v640 = vadd.f32 %v460, %v639
      %641 = vmatmul.f32.gmra.mxu0 %v530
      %v642 = vpop.f32.mrf.mxu0
      %v643 = vadd.f32 %v460, %v642
      %644 = vmatmul.f32.gmra.mxu0 %v533
      %v645 = vpop.f32.mrf.mxu0
      %v646 = vadd.f32 %v460, %v645
      %647 = vmatmul.f32.gmra.mxu0 %v536
      %v648 = vpop.f32.mrf.mxu0
      %v649 = vadd.f32 %v460, %v648
      %650 = vmatmul.f32.gmra.mxu0 %v539
      %v651 = vpop.f32.mrf.mxu0
      %v652 = vadd.f32 %v460, %v651
      %653 = vmatmul.f32.gmra.mxu0 %v542
      %v654 = vpop.f32.mrf.mxu0
      %v655 = vadd.f32 %v460, %v654
      %656 = vmatmul.f32.gmra.mxu0 %v545
      %v657 = vpop.f32.mrf.mxu0
      %v658 = vadd.f32 %v460, %v657
      %659 = vmatmul.f32.gmra.mxu0 %v548
      %v660 = vpop.f32.mrf.mxu0
      %v661 = vadd.f32 %v460, %v660
      %662 = vmatmul.f32.gmra.mxu0 %v551
      %v663 = vpop.f32.mrf.mxu0
      %v664 = vadd.f32 %v460, %v663
      %665 = vmatmul.f32.gmra.mxu0 %v554
      %v666 = vpop.f32.mrf.mxu0
      %v667 = vadd.f32 %v460, %v666
      %668 = vmatmul.f32.gmra.mxu0 %v557
      %v669 = vpop.f32.mrf.mxu0
      %v670 = vadd.f32 %v460, %v669
      %671 = vdwg.mxu0
      %v672 = vxor.u32 %v577, 2147483648
      %v673 = vxor.u32 %v580, 2147483648
      %v674 = vxor.u32 %v583, 2147483648
      %v675 = vxor.u32 %v586, 2147483648
      %v676 = vxor.u32 %v589, 2147483648
      %v677 = vxor.u32 %v592, 2147483648
      %v678 = vxor.u32 %v595, 2147483648
      %v679 = vxor.u32 %v598, 2147483648
      %v680 = vxor.u32 %v601, 2147483648
      %v681 = vxor.u32 %v604, 2147483648
      %v682 = vxor.u32 %v607, 2147483648
      %v683 = vxor.u32 %v610, 2147483648
      %v684 = vxor.u32 %v613, 2147483648
      %v685 = vxor.u32 %v616, 2147483648
      %v686 = vxor.u32 %v619, 2147483648
      %v687 = vxor.u32 %v622, 2147483648
      %v688 = vxor.u32 %v625, 2147483648
      %v689 = vxor.u32 %v628, 2147483648
      %v690 = vxor.u32 %v631, 2147483648
      %v691 = vxor.u32 %v634, 2147483648
      %v692 = vxor.u32 %v637, 2147483648
      %v693 = vxor.u32 %v640, 2147483648
      %v694 = vxor.u32 %v643, 2147483648
      %v695 = vxor.u32 %v646, 2147483648
      %v696 = vxor.u32 %v649, 2147483648
      %v697 = vxor.u32 %v652, 2147483648
      %v698 = vxor.u32 %v655, 2147483648
      %v699 = vxor.u32 %v658, 2147483648
      %v700 = vxor.u32 %v661, 2147483648
      %v701 = vxor.u32 %v664, 2147483648
      %v702 = vxor.u32 %v667, 2147483648
      %v703 = vxor.u32 %v670, 2147483648
      %v704 = vmul.f32 %v672, 1.442695
      %v705 = vpow.pop %v704
      %v706 = vmul.f32 %v673, 1.442695
      %v707 = vpow.pop %v706
      %v708 = vmul.f32 %v674, 1.442695
      %v709 = vpow.pop %v708
      %v710 = vmul.f32 %v675, 1.442695
      %v711 = vpow.pop %v710
      %v712 = vmul.f32 %v676, 1.442695
      %v713 = vpow.pop %v712
      %v714 = vmul.f32 %v677, 1.442695
      %v715 = vpow.pop %v714
      %v716 = vmul.f32 %v678, 1.442695
      %v717 = vpow.pop %v716
      %v718 = vmul.f32 %v679, 1.442695
      %v719 = vpow.pop %v718
      %v720 = vmul.f32 %v680, 1.442695
      %v721 = vpow.pop %v720
      %v722 = vmul.f32 %v681, 1.442695
      %v723 = vpow.pop %v722
      %v724 = vmul.f32 %v682, 1.442695
      %v725 = vpow.pop %v724
      %v726 = vmul.f32 %v683, 1.442695
      %v727 = vpow.pop %v726
      %v728 = vmul.f32 %v684, 1.442695
      %v729 = vpow.pop %v728
      %v730 = vmul.f32 %v685, 1.442695
      %v731 = vpow.pop %v730
      %v732 = vmul.f32 %v686, 1.442695
      %v733 = vpow.pop %v732
      %v734 = vmul.f32 %v687, 1.442695
      %v735 = vpow.pop %v734
      %v736 = vmul.f32 %v688, 1.442695
      %v737 = vpow.pop %v736
      %v738 = vmul.f32 %v689, 1.442695
      %v739 = vpow.pop %v738
      %v740 = vmul.f32 %v690, 1.442695
      %v741 = vpow.pop %v740
      %v742 = vmul.f32 %v691, 1.442695
      %v743 = vpow.pop %v742
      %v744 = vmul.f32 %v692, 1.442695
      %v745 = vpow.pop %v744
      %v746 = vmul.f32 %v693, 1.442695
      %v747 = vpow.pop %v746
      %v748 = vmul.f32 %v694, 1.442695
      %v749 = vpow.pop %v748
      %v750 = vmul.f32 %v695, 1.442695
      %v751 = vpow.pop %v750
      %v752 = vmul.f32 %v696, 1.442695
      %v753 = vpow.pop %v752
      %v754 = vmul.f32 %v697, 1.442695
      %v755 = vpow.pop %v754
      %v756 = vmul.f32 %v698, 1.442695
      %v757 = vpow.pop %v756
      %v758 = vmul.f32 %v699, 1.442695
      %v759 = vpow.pop %v758
      %v760 = vmul.f32 %v700, 1.442695
      %v761 = vpow.pop %v760
      %v762 = vmul.f32 %v701, 1.442695
      %v763 = vpow.pop %v762
      %v764 = vmul.f32 %v702, 1.442695
      %v765 = vpow.pop %v764
      %v766 = vmul.f32 %v703, 1.442695
      %v767 = vpow.pop %v766
      %v768 = vadd.f32 %v705, 1.0
      %v769 = vadd.f32 %v707, 1.0
      %v770 = vadd.f32 %v709, 1.0
      %v771 = vadd.f32 %v711, 1.0
      %v772 = vadd.f32 %v713, 1.0
      %v773 = vadd.f32 %v715, 1.0
      %v774 = vadd.f32 %v717, 1.0
      %v775 = vadd.f32 %v719, 1.0
      %v776 = vadd.f32 %v721, 1.0
      %v777 = vadd.f32 %v723, 1.0
      %v778 = vadd.f32 %v725, 1.0
      %v779 = vadd.f32 %v727, 1.0
      %v780 = vadd.f32 %v729, 1.0
      %v781 = vadd.f32 %v731, 1.0
      %v782 = vadd.f32 %v733, 1.0
      %v783 = vadd.f32 %v735, 1.0
      %v784 = vadd.f32 %v737, 1.0
      %v785 = vadd.f32 %v739, 1.0
      %v786 = vadd.f32 %v741, 1.0
      %v787 = vadd.f32 %v743, 1.0
      %v788 = vadd.f32 %v745, 1.0
      %v789 = vadd.f32 %v747, 1.0
      %v790 = vadd.f32 %v749, 1.0
      %v791 = vadd.f32 %v751, 1.0
      %v792 = vadd.f32 %v753, 1.0
      %v793 = vadd.f32 %v755, 1.0
      %v794 = vadd.f32 %v757, 1.0
      %v795 = vadd.f32 %v759, 1.0
      %v796 = vadd.f32 %v761, 1.0
      %v797 = vadd.f32 %v763, 1.0
      %v798 = vadd.f32 %v765, 1.0
      %v799 = vadd.f32 %v767, 1.0
      %v800 = vrcp.pop %v768
      %v801 = vmul.f32 %v768, %v800
      %v802 = vsub.f32 1.0, %v801
      %v803 = vmul.f32 %v800, %v802
      %v804 = vadd.f32 %v800, %v803
      %vm805 = vweird.f32 %v768
      %vm806 = vweird.f32 %v800
      %vm807 = vmor %vm805, %vm806
      %v808 = vsel %vm807, %v800, %v804
      %v809 = vand.u32 2147483647, %v768
      %vm810 = vcmp.eq.f32.partialorder %v809, 8.507059e+37
      %v811 = vand.u32 %v768, 2147483648
      %v812 = vor.u32 1.1754944e-38, %v811
      %v813 = vsel %vm810, %v812, %v808
      %v814 = vmul.f32 1.0, %v813
      %v815 = vrcp.pop %v769
      %v816 = vmul.f32 %v769, %v815
      %v817 = vsub.f32 1.0, %v816
      %v818 = vmul.f32 %v815, %v817
      %v819 = vadd.f32 %v815, %v818
      %vm820 = vweird.f32 %v769
      %vm821 = vweird.f32 %v815
      %vm822 = vmor %vm820, %vm821
      %v823 = vsel %vm822, %v815, %v819
      %v824 = vand.u32 2147483647, %v769
      %vm825 = vcmp.eq.f32.partialorder %v824, 8.507059e+37
      %v826 = vand.u32 %v769, 2147483648
      %v827 = vor.u32 1.1754944e-38, %v826
      %v828 = vsel %vm825, %v827, %v823
      %v829 = vmul.f32 1.0, %v828
      %v830 = vrcp.pop %v770
      %v831 = vmul.f32 %v770, %v830
      %v832 = vsub.f32 1.0, %v831
      %v833 = vmul.f32 %v830, %v832
      %v834 = vadd.f32 %v830, %v833
      %vm835 = vweird.f32 %v770
      %vm836 = vweird.f32 %v830
      %vm837 = vmor %vm835, %vm836
      %v838 = vsel %vm837, %v830, %v834
      %v839 = vand.u32 2147483647, %v770
      %vm840 = vcmp.eq.f32.partialorder %v839, 8.507059e+37
      %v841 = vand.u32 %v770, 2147483648
      %v842 = vor.u32 1.1754944e-38, %v841
      %v843 = vsel %vm840, %v842, %v838
      %v844 = vmul.f32 1.0, %v843
      %v845 = vrcp.pop %v771
      %v846 = vmul.f32 %v771, %v845
      %v847 = vsub.f32 1.0, %v846
      %v848 = vmul.f32 %v845, %v847
      %v849 = vadd.f32 %v845, %v848
      %vm850 = vweird.f32 %v771
      %vm851 = vweird.f32 %v845
      %vm852 = vmor %vm850, %vm851
      %v853 = vsel %vm852, %v845, %v849
      %v854 = vand.u32 2147483647, %v771
      %vm855 = vcmp.eq.f32.partialorder %v854, 8.507059e+37
      %v856 = vand.u32 %v771, 2147483648
      %v857 = vor.u32 1.1754944e-38, %v856
      %v858 = vsel %vm855, %v857, %v853
      %v859 = vmul.f32 1.0, %v858
      %v860 = vrcp.pop %v772
      %v861 = vmul.f32 %v772, %v860
      %v862 = vsub.f32 1.0, %v861
      %v863 = vmul.f32 %v860, %v862
      %v864 = vadd.f32 %v860, %v863
      %vm865 = vweird.f32 %v772
      %vm866 = vweird.f32 %v860
      %vm867 = vmor %vm865, %vm866
      %v868 = vsel %vm867, %v860, %v864
      %v869 = vand.u32 2147483647, %v772
      %vm870 = vcmp.eq.f32.partialorder %v869, 8.507059e+37
      %v871 = vand.u32 %v772, 2147483648
      %v872 = vor.u32 1.1754944e-38, %v871
      %v873 = vsel %vm870, %v872, %v868
      %v874 = vmul.f32 1.0, %v873
      %v875 = vrcp.pop %v773
      %v876 = vmul.f32 %v773, %v875
      %v877 = vsub.f32 1.0, %v876
      %v878 = vmul.f32 %v875, %v877
      %v879 = vadd.f32 %v875, %v878
      %vm880 = vweird.f32 %v773
      %vm881 = vweird.f32 %v875
      %vm882 = vmor %vm880, %vm881
      %v883 = vsel %vm882, %v875, %v879
      %v884 = vand.u32 2147483647, %v773
      %vm885 = vcmp.eq.f32.partialorder %v884, 8.507059e+37
      %v886 = vand.u32 %v773, 2147483648
      %v887 = vor.u32 1.1754944e-38, %v886
      %v888 = vsel %vm885, %v887, %v883
      %v889 = vmul.f32 1.0, %v888
      %v890 = vrcp.pop %v774
      %v891 = vmul.f32 %v774, %v890
      %v892 = vsub.f32 1.0, %v891
      %v893 = vmul.f32 %v890, %v892
      %v894 = vadd.f32 %v890, %v893
      %vm895 = vweird.f32 %v774
      %vm896 = vweird.f32 %v890
      %vm897 = vmor %vm895, %vm896
      %v898 = vsel %vm897, %v890, %v894
      %v899 = vand.u32 2147483647, %v774
      %vm900 = vcmp.eq.f32.partialorder %v899, 8.507059e+37
      %v901 = vand.u32 %v774, 2147483648
      %v902 = vor.u32 1.1754944e-38, %v901
      %v903 = vsel %vm900, %v902, %v898
      %v904 = vmul.f32 1.0, %v903
      %v905 = vrcp.pop %v775
      %v906 = vmul.f32 %v775, %v905
      %v907 = vsub.f32 1.0, %v906
      %v908 = vmul.f32 %v905, %v907
      %v909 = vadd.f32 %v905, %v908
      %vm910 = vweird.f32 %v775
      %vm911 = vweird.f32 %v905
      %vm912 = vmor %vm910, %vm911
      %v913 = vsel %vm912, %v905, %v909
      %v914 = vand.u32 2147483647, %v775
      %vm915 = vcmp.eq.f32.partialorder %v914, 8.507059e+37
      %v916 = vand.u32 %v775, 2147483648
      %v917 = vor.u32 1.1754944e-38, %v916
      %v918 = vsel %vm915, %v917, %v913
      %v919 = vmul.f32 1.0, %v918
      %v920 = vrcp.pop %v776
      %v921 = vmul.f32 %v776, %v920
      %v922 = vsub.f32 1.0, %v921
      %v923 = vmul.f32 %v920, %v922
      %v924 = vadd.f32 %v920, %v923
      %vm925 = vweird.f32 %v776
      %vm926 = vweird.f32 %v920
      %vm927 = vmor %vm925, %vm926
      %v928 = vsel %vm927, %v920, %v924
      %v929 = vand.u32 2147483647, %v776
      %vm930 = vcmp.eq.f32.partialorder %v929, 8.507059e+37
      %v931 = vand.u32 %v776, 2147483648
      %v932 = vor.u32 1.1754944e-38, %v931
      %v933 = vsel %vm930, %v932, %v928
      %v934 = vmul.f32 1.0, %v933
      %v935 = vrcp.pop %v777
      %v936 = vmul.f32 %v777, %v935
      %v937 = vsub.f32 1.0, %v936
      %v938 = vmul.f32 %v935, %v937
      %v939 = vadd.f32 %v935, %v938
      %vm940 = vweird.f32 %v777
      %vm941 = vweird.f32 %v935
      %vm942 = vmor %vm940, %vm941
      %v943 = vsel %vm942, %v935, %v939
      %v944 = vand.u32 2147483647, %v777
      %vm945 = vcmp.eq.f32.partialorder %v944, 8.507059e+37
      %v946 = vand.u32 %v777, 2147483648
      %v947 = vor.u32 1.1754944e-38, %v946
      %v948 = vsel %vm945, %v947, %v943
      %v949 = vmul.f32 1.0, %v948
      %v950 = vrcp.pop %v778
      %v951 = vmul.f32 %v778, %v950
      %v952 = vsub.f32 1.0, %v951
      %v953 = vmul.f32 %v950, %v952
      %v954 = vadd.f32 %v950, %v953
      %vm955 = vweird.f32 %v778
      %vm956 = vweird.f32 %v950
      %vm957 = vmor %vm955, %vm956
      %v958 = vsel %vm957, %v950, %v954
      %v959 = vand.u32 2147483647, %v778
      %vm960 = vcmp.eq.f32.partialorder %v959, 8.507059e+37
      %v961 = vand.u32 %v778, 2147483648
      %v962 = vor.u32 1.1754944e-38, %v961
      %v963 = vsel %vm960, %v962, %v958
      %v964 = vmul.f32 1.0, %v963
      %v965 = vrcp.pop %v779
      %v966 = vmul.f32 %v779, %v965
      %v967 = vsub.f32 1.0, %v966
      %v968 = vmul.f32 %v965, %v967
      %v969 = vadd.f32 %v965, %v968
      %vm970 = vweird.f32 %v779
      %vm971 = vweird.f32 %v965
      %vm972 = vmor %vm970, %vm971
      %v973 = vsel %vm972, %v965, %v969
      %v974 = vand.u32 2147483647, %v779
      %vm975 = vcmp.eq.f32.partialorder %v974, 8.507059e+37
      %v976 = vand.u32 %v779, 2147483648
      %v977 = vor.u32 1.1754944e-38, %v976
      %v978 = vsel %vm975, %v977, %v973
      %v979 = vmul.f32 1.0, %v978
      %v980 = vrcp.pop %v780
      %v981 = vmul.f32 %v780, %v980
      %v982 = vsub.f32 1.0, %v981
      %v983 = vmul.f32 %v980, %v982
      %v984 = vadd.f32 %v980, %v983
      %vm985 = vweird.f32 %v780
      %vm986 = vweird.f32 %v980
      %vm987 = vmor %vm985, %vm986
      %v988 = vsel %vm987, %v980, %v984
      %v989 = vand.u32 2147483647, %v780
      %vm990 = vcmp.eq.f32.partialorder %v989, 8.507059e+37
      %v991 = vand.u32 %v780, 2147483648
      %v992 = vor.u32 1.1754944e-38, %v991
      %v993 = vsel %vm990, %v992, %v988
      %v994 = vmul.f32 1.0, %v993
      %v995 = vrcp.pop %v781
      %v996 = vmul.f32 %v781, %v995
      %v997 = vsub.f32 1.0, %v996
      %v998 = vmul.f32 %v995, %v997
      %v999 = vadd.f32 %v995, %v998
      %vm1000 = vweird.f32 %v781
      %vm1001 = vweird.f32 %v995
      %vm1002 = vmor %vm1000, %vm1001
      %v1003 = vsel %vm1002, %v995, %v999
      %v1004 = vand.u32 2147483647, %v781
      %vm1005 = vcmp.eq.f32.partialorder %v1004, 8.507059e+37
      %v1006 = vand.u32 %v781, 2147483648
      %v1007 = vor.u32 1.1754944e-38, %v1006
      %v1008 = vsel %vm1005, %v1007, %v1003
      %v1009 = vmul.f32 1.0, %v1008
      %v1010 = vrcp.pop %v782
      %v1011 = vmul.f32 %v782, %v1010
      %v1012 = vsub.f32 1.0, %v1011
      %v1013 = vmul.f32 %v1010, %v1012
      %v1014 = vadd.f32 %v1010, %v1013
      %vm1015 = vweird.f32 %v782
      %vm1016 = vweird.f32 %v1010
      %vm1017 = vmor %vm1015, %vm1016
      %v1018 = vsel %vm1017, %v1010, %v1014
      %v1019 = vand.u32 2147483647, %v782
      %vm1020 = vcmp.eq.f32.partialorder %v1019, 8.507059e+37
      %v1021 = vand.u32 %v782, 2147483648
      %v1022 = vor.u32 1.1754944e-38, %v1021
      %v1023 = vsel %vm1020, %v1022, %v1018
      %v1024 = vmul.f32 1.0, %v1023
      %v1025 = vrcp.pop %v783
      %v1026 = vmul.f32 %v783, %v1025
      %v1027 = vsub.f32 1.0, %v1026
      %v1028 = vmul.f32 %v1025, %v1027
      %v1029 = vadd.f32 %v1025, %v1028
      %vm1030 = vweird.f32 %v783
      %vm1031 = vweird.f32 %v1025
      %vm1032 = vmor %vm1030, %vm1031
      %v1033 = vsel %vm1032, %v1025, %v1029
      %v1034 = vand.u32 2147483647, %v783
      %vm1035 = vcmp.eq.f32.partialorder %v1034, 8.507059e+37
      %v1036 = vand.u32 %v783, 2147483648
      %v1037 = vor.u32 1.1754944e-38, %v1036
      %v1038 = vsel %vm1035, %v1037, %v1033
      %v1039 = vmul.f32 1.0, %v1038
      %v1040 = vrcp.pop %v784
      %v1041 = vmul.f32 %v784, %v1040
      %v1042 = vsub.f32 1.0, %v1041
      %v1043 = vmul.f32 %v1040, %v1042
      %v1044 = vadd.f32 %v1040, %v1043
      %vm1045 = vweird.f32 %v784
      %vm1046 = vweird.f32 %v1040
      %vm1047 = vmor %vm1045, %vm1046
      %v1048 = vsel %vm1047, %v1040, %v1044
      %v1049 = vand.u32 2147483647, %v784
      %vm1050 = vcmp.eq.f32.partialorder %v1049, 8.507059e+37
      %v1051 = vand.u32 %v784, 2147483648
      %v1052 = vor.u32 1.1754944e-38, %v1051
      %v1053 = vsel %vm1050, %v1052, %v1048
      %v1054 = vmul.f32 1.0, %v1053
      %v1055 = vrcp.pop %v785
      %v1056 = vmul.f32 %v785, %v1055
      %v1057 = vsub.f32 1.0, %v1056
      %v1058 = vmul.f32 %v1055, %v1057
      %v1059 = vadd.f32 %v1055, %v1058
      %vm1060 = vweird.f32 %v785
      %vm1061 = vweird.f32 %v1055
      %vm1062 = vmor %vm1060, %vm1061
      %v1063 = vsel %vm1062, %v1055, %v1059
      %v1064 = vand.u32 2147483647, %v785
      %vm1065 = vcmp.eq.f32.partialorder %v1064, 8.507059e+37
      %v1066 = vand.u32 %v785, 2147483648
      %v1067 = vor.u32 1.1754944e-38, %v1066
      %v1068 = vsel %vm1065, %v1067, %v1063
      %v1069 = vmul.f32 1.0, %v1068
      %v1070 = vrcp.pop %v786
      %v1071 = vmul.f32 %v786, %v1070
      %v1072 = vsub.f32 1.0, %v1071
      %v1073 = vmul.f32 %v1070, %v1072
      %v1074 = vadd.f32 %v1070, %v1073
      %vm1075 = vweird.f32 %v786
      %vm1076 = vweird.f32 %v1070
      %vm1077 = vmor %vm1075, %vm1076
      %v1078 = vsel %vm1077, %v1070, %v1074
      %v1079 = vand.u32 2147483647, %v786
      %vm1080 = vcmp.eq.f32.partialorder %v1079, 8.507059e+37
      %v1081 = vand.u32 %v786, 2147483648
      %v1082 = vor.u32 1.1754944e-38, %v1081
      %v1083 = vsel %vm1080, %v1082, %v1078
      %v1084 = vmul.f32 1.0, %v1083
      %v1085 = vrcp.pop %v787
      %v1086 = vmul.f32 %v787, %v1085
      %v1087 = vsub.f32 1.0, %v1086
      %v1088 = vmul.f32 %v1085, %v1087
      %v1089 = vadd.f32 %v1085, %v1088
      %vm1090 = vweird.f32 %v787
      %vm1091 = vweird.f32 %v1085
      %vm1092 = vmor %vm1090, %vm1091
      %v1093 = vsel %vm1092, %v1085, %v1089
      %v1094 = vand.u32 2147483647, %v787
      %vm1095 = vcmp.eq.f32.partialorder %v1094, 8.507059e+37
      %v1096 = vand.u32 %v787, 2147483648
      %v1097 = vor.u32 1.1754944e-38, %v1096
      %v1098 = vsel %vm1095, %v1097, %v1093
      %v1099 = vmul.f32 1.0, %v1098
      %v1100 = vrcp.pop %v788
      %v1101 = vmul.f32 %v788, %v1100
      %v1102 = vsub.f32 1.0, %v1101
      %v1103 = vmul.f32 %v1100, %v1102
      %v1104 = vadd.f32 %v1100, %v1103
      %vm1105 = vweird.f32 %v788
      %vm1106 = vweird.f32 %v1100
      %vm1107 = vmor %vm1105, %vm1106
      %v1108 = vsel %vm1107, %v1100, %v1104
      %v1109 = vand.u32 2147483647, %v788
      %vm1110 = vcmp.eq.f32.partialorder %v1109, 8.507059e+37
      %v1111 = vand.u32 %v788, 2147483648
      %v1112 = vor.u32 1.1754944e-38, %v1111
      %v1113 = vsel %vm1110, %v1112, %v1108
      %v1114 = vmul.f32 1.0, %v1113
      %v1115 = vrcp.pop %v789
      %v1116 = vmul.f32 %v789, %v1115
      %v1117 = vsub.f32 1.0, %v1116
      %v1118 = vmul.f32 %v1115, %v1117
      %v1119 = vadd.f32 %v1115, %v1118
      %vm1120 = vweird.f32 %v789
      %vm1121 = vweird.f32 %v1115
      %vm1122 = vmor %vm1120, %vm1121
      %v1123 = vsel %vm1122, %v1115, %v1119
      %v1124 = vand.u32 2147483647, %v789
      %vm1125 = vcmp.eq.f32.partialorder %v1124, 8.507059e+37
      %v1126 = vand.u32 %v789, 2147483648
      %v1127 = vor.u32 1.1754944e-38, %v1126
      %v1128 = vsel %vm1125, %v1127, %v1123
      %v1129 = vmul.f32 1.0, %v1128
      %v1130 = vrcp.pop %v790
      %v1131 = vmul.f32 %v790, %v1130
      %v1132 = vsub.f32 1.0, %v1131
      %v1133 = vmul.f32 %v1130, %v1132
      %v1134 = vadd.f32 %v1130, %v1133
      %vm1135 = vweird.f32 %v790
      %vm1136 = vweird.f32 %v1130
      %vm1137 = vmor %vm1135, %vm1136
      %v1138 = vsel %vm1137, %v1130, %v1134
      %v1139 = vand.u32 2147483647, %v790
      %vm1140 = vcmp.eq.f32.partialorder %v1139, 8.507059e+37
      %v1141 = vand.u32 %v790, 2147483648
      %v1142 = vor.u32 1.1754944e-38, %v1141
      %v1143 = vsel %vm1140, %v1142, %v1138
      %v1144 = vmul.f32 1.0, %v1143
      %v1145 = vrcp.pop %v791
      %v1146 = vmul.f32 %v791, %v1145
      %v1147 = vsub.f32 1.0, %v1146
      %v1148 = vmul.f32 %v1145, %v1147
      %v1149 = vadd.f32 %v1145, %v1148
      %vm1150 = vweird.f32 %v791
      %vm1151 = vweird.f32 %v1145
      %vm1152 = vmor %vm1150, %vm1151
      %v1153 = vsel %vm1152, %v1145, %v1149
      %v1154 = vand.u32 2147483647, %v791
      %vm1155 = vcmp.eq.f32.partialorder %v1154, 8.507059e+37
      %v1156 = vand.u32 %v791, 2147483648
      %v1157 = vor.u32 1.1754944e-38, %v1156
      %v1158 = vsel %vm1155, %v1157, %v1153
      %v1159 = vmul.f32 1.0, %v1158
      %v1160 = vrcp.pop %v792
      %v1161 = vmul.f32 %v792, %v1160
      %v1162 = vsub.f32 1.0, %v1161
      %v1163 = vmul.f32 %v1160, %v1162
      %v1164 = vadd.f32 %v1160, %v1163
      %vm1165 = vweird.f32 %v792
      %vm1166 = vweird.f32 %v1160
      %vm1167 = vmor %vm1165, %vm1166
      %v1168 = vsel %vm1167, %v1160, %v1164
      %v1169 = vand.u32 2147483647, %v792
      %vm1170 = vcmp.eq.f32.partialorder %v1169, 8.507059e+37
      %v1171 = vand.u32 %v792, 2147483648
      %v1172 = vor.u32 1.1754944e-38, %v1171
      %v1173 = vsel %vm1170, %v1172, %v1168
      %v1174 = vmul.f32 1.0, %v1173
      %v1175 = vrcp.pop %v793
      %v1176 = vmul.f32 %v793, %v1175
      %v1177 = vsub.f32 1.0, %v1176
      %v1178 = vmul.f32 %v1175, %v1177
      %v1179 = vadd.f32 %v1175, %v1178
      %vm1180 = vweird.f32 %v793
      %vm1181 = vweird.f32 %v1175
      %vm1182 = vmor %vm1180, %vm1181
      %v1183 = vsel %vm1182, %v1175, %v1179
      %v1184 = vand.u32 2147483647, %v793
      %vm1185 = vcmp.eq.f32.partialorder %v1184, 8.507059e+37
      %v1186 = vand.u32 %v793, 2147483648
      %v1187 = vor.u32 1.1754944e-38, %v1186
      %v1188 = vsel %vm1185, %v1187, %v1183
      %v1189 = vmul.f32 1.0, %v1188
      %v1190 = vrcp.pop %v794
      %v1191 = vmul.f32 %v794, %v1190
      %v1192 = vsub.f32 1.0, %v1191
      %v1193 = vmul.f32 %v1190, %v1192
      %v1194 = vadd.f32 %v1190, %v1193
      %vm1195 = vweird.f32 %v794
      %vm1196 = vweird.f32 %v1190
      %vm1197 = vmor %vm1195, %vm1196
      %v1198 = vsel %vm1197, %v1190, %v1194
      %v1199 = vand.u32 2147483647, %v794
      %vm1200 = vcmp.eq.f32.partialorder %v1199, 8.507059e+37
      %v1201 = vand.u32 %v794, 2147483648
      %v1202 = vor.u32 1.1754944e-38, %v1201
      %v1203 = vsel %vm1200, %v1202, %v1198
      %v1204 = vmul.f32 1.0, %v1203
      %v1205 = vrcp.pop %v795
      %v1206 = vmul.f32 %v795, %v1205
      %v1207 = vsub.f32 1.0, %v1206
      %v1208 = vmul.f32 %v1205, %v1207
      %v1209 = vadd.f32 %v1205, %v1208
      %vm1210 = vweird.f32 %v795
      %vm1211 = vweird.f32 %v1205
      %vm1212 = vmor %vm1210, %vm1211
      %v1213 = vsel %vm1212, %v1205, %v1209
      %v1214 = vand.u32 2147483647, %v795
      %vm1215 = vcmp.eq.f32.partialorder %v1214, 8.507059e+37
      %v1216 = vand.u32 %v795, 2147483648
      %v1217 = vor.u32 1.1754944e-38, %v1216
      %v1218 = vsel %vm1215, %v1217, %v1213
      %v1219 = vmul.f32 1.0, %v1218
      %v1220 = vrcp.pop %v796
      %v1221 = vmul.f32 %v796, %v1220
      %v1222 = vsub.f32 1.0, %v1221
      %v1223 = vmul.f32 %v1220, %v1222
      %v1224 = vadd.f32 %v1220, %v1223
      %vm1225 = vweird.f32 %v796
      %vm1226 = vweird.f32 %v1220
      %vm1227 = vmor %vm1225, %vm1226
      %v1228 = vsel %vm1227, %v1220, %v1224
      %v1229 = vand.u32 2147483647, %v796
      %vm1230 = vcmp.eq.f32.partialorder %v1229, 8.507059e+37
      %v1231 = vand.u32 %v796, 2147483648
      %v1232 = vor.u32 1.1754944e-38, %v1231
      %v1233 = vsel %vm1230, %v1232, %v1228
      %v1234 = vmul.f32 1.0, %v1233
      %v1235 = vrcp.pop %v797
      %v1236 = vmul.f32 %v797, %v1235
      %v1237 = vsub.f32 1.0, %v1236
      %v1238 = vmul.f32 %v1235, %v1237
      %v1239 = vadd.f32 %v1235, %v1238
      %vm1240 = vweird.f32 %v797
      %vm1241 = vweird.f32 %v1235
      %vm1242 = vmor %vm1240, %vm1241
      %v1243 = vsel %vm1242, %v1235, %v1239
      %v1244 = vand.u32 2147483647, %v797
      %vm1245 = vcmp.eq.f32.partialorder %v1244, 8.507059e+37
      %v1246 = vand.u32 %v797, 2147483648
      %v1247 = vor.u32 1.1754944e-38, %v1246
      %v1248 = vsel %vm1245, %v1247, %v1243
      %v1249 = vmul.f32 1.0, %v1248
      %v1250 = vrcp.pop %v798
      %v1251 = vmul.f32 %v798, %v1250
      %v1252 = vsub.f32 1.0, %v1251
      %v1253 = vmul.f32 %v1250, %v1252
      %v1254 = vadd.f32 %v1250, %v1253
      %vm1255 = vweird.f32 %v798
      %vm1256 = vweird.f32 %v1250
      %vm1257 = vmor %vm1255, %vm1256
      %v1258 = vsel %vm1257, %v1250, %v1254
      %v1259 = vand.u32 2147483647, %v798
      %vm1260 = vcmp.eq.f32.partialorder %v1259, 8.507059e+37
      %v1261 = vand.u32 %v798, 2147483648
      %v1262 = vor.u32 1.1754944e-38, %v1261
      %v1263 = vsel %vm1260, %v1262, %v1258
      %v1264 = vmul.f32 1.0, %v1263
      %v1265 = vrcp.pop %v799
      %v1266 = vmul.f32 %v799, %v1265
      %v1267 = vsub.f32 1.0, %v1266
      %v1268 = vmul.f32 %v1265, %v1267
      %v1269 = vadd.f32 %v1265, %v1268
      %vm1270 = vweird.f32 %v799
      %vm1271 = vweird.f32 %v1265
      %vm1272 = vmor %vm1270, %vm1271
      %v1273 = vsel %vm1272, %v1265, %v1269
      %v1274 = vand.u32 2147483647, %v799
      %vm1275 = vcmp.eq.f32.partialorder %v1274, 8.507059e+37
      %v1276 = vand.u32 %v799, 2147483648
      %v1277 = vor.u32 1.1754944e-38, %v1276
      %v1278 = vsel %vm1275, %v1277, %v1273
      %v1279 = vmul.f32 1.0, %v1278
      %v1280 = vmax.f32 %v814, %v874
      %v1281 = vmax.f32 %v829, %v889
      %v1282 = vmax.f32 %v844, %v904
      %v1283 = vmax.f32 %v859, %v919
      %v1284 = vmax.f32 %v1280, %v934
      %v1285 = vmax.f32 %v1281, %v949
      %v1286 = vmax.f32 %v1282, %v964
      %v1287 = vmax.f32 %v1283, %v979
      %v1288 = vmax.f32 %v1284, %v994
      %v1289 = vmax.f32 %v1285, %v1009
      %v1290 = vmax.f32 %v1286, %v1024
      %v1291 = vmax.f32 %v1287, %v1039
      %v1292 = vmax.f32 %v1288, %v1054
      %v1293 = vmax.f32 %v1289, %v1069
      %v1294 = vmax.f32 %v1290, %v1084
      %v1295 = vmax.f32 %v1291, %v1099
      %v1296 = vmax.f32 %v1292, %v1114
      %v1297 = vmax.f32 %v1293, %v1129
      %v1298 = vmax.f32 %v1294, %v1144
      %v1299 = vmax.f32 %v1295, %v1159
      %v1300 = vmax.f32 %v1296, %v1174
      %v1301 = vmax.f32 %v1297, %v1189
      %v1302 = vmax.f32 %v1298, %v1204
      %v1303 = vmax.f32 %v1299, %v1219
      %v1304 = vmax.f32 %v1300, %v1234
      %v1305 = vmax.f32 %v1301, %v1249
      %v1306 = vmax.f32 %v1302, %v1264
      %v1307 = vmax.f32 %v1303, %v1279
      %v1308 = vld [vmem:[%s3] sm:$0xff]
      %v1309 = vld [vmem:[%s3 + $0x8] sm:$0xff]
      %v1310 = vld [vmem:[%s3 + $0x10] sm:$0xff]
      %v1311 = vld [vmem:[%s3 + $0x18] sm:$0xff]
      %v1312 = vld [vmem:[%s4] sm:$0x1]
      %v1314 = vperm.slane %v1312, 0
      %v1317 = vsel %vm462, %v1304, 0
      %v1320 = vsel %vm462, %v1305, 0
      %v1323 = vsel %vm462, %v1306, 0
      %v1326 = vsel %vm462, %v1307, 0
      %1328 = vmatpush.msra.mxu0 0.0
      %1329 = vmatpush.msra.mxu0 0.0
      %1330 = vmatpush.msra.mxu0 0.0
      %1331 = vmatpush.msra.mxu0 0.0
      %1332 = vmatpush.msra.mxu0 0.0
      %1333 = vmatpush.msra.mxu0 0.0
      %1334 = vmatpush.msra.mxu0 0.0
      %1335 = vmatpush.msra.mxu0 0.0
      %1336 = vmatpush.msra.mxu0 0.0
      %1337 = vmatpush.msra.mxu0 0.0
      %1338 = vmatpush.msra.mxu0 0.0
      %1339 = vmatpush.msra.mxu0 0.0
      %1340 = vmatpush.msra.mxu0 %v1311
      %1341 = vmatpush.msra.mxu0 %v1310
      %1342 = vmatpush.msra.mxu0 %v1309
      %1343 = vmatpush.msra.mxu0 %v1308
      %1344 = vmatmul.f32.gmra.mxu0 %v1317
      %v1345 = vpop.f32.mrf.mxu0
      %v1346 = vadd.f32 %v1314, %v1345
      %1347 = vmatmul.f32.gmra.mxu0 %v1320
      %v1348 = vpop.f32.mrf.mxu0
      %v1349 = vadd.f32 %v1314, %v1348
      %1350 = vmatmul.f32.gmra.mxu0 %v1323
      %v1351 = vpop.f32.mrf.mxu0
      %v1352 = vadd.f32 %v1314, %v1351
      %1353 = vmatmul.f32.gmra.mxu0 %v1326
      %v1354 = vpop.f32.mrf.mxu0
      %v1355 = vadd.f32 %v1314, %v1354
      %1356 = vdwg.mxu0
      %v1357 = vxor.u32 %v1346, 2147483648
      %v1358 = vxor.u32 %v1349, 2147483648
      %v1359 = vxor.u32 %v1352, 2147483648
      %v1360 = vxor.u32 %v1355, 2147483648
      %v1361 = vmul.f32 %v1357, 1.442695
      %v1362 = vpow.pop %v1361
      %v1363 = vmul.f32 %v1358, 1.442695
      %v1364 = vpow.pop %v1363
      %v1365 = vmul.f32 %v1359, 1.442695
      %v1366 = vpow.pop %v1365
      %v1367 = vmul.f32 %v1360, 1.442695
      %v1368 = vpow.pop %v1367
      %v1369 = vadd.f32 %v1362, 1.0
      %v1370 = vadd.f32 %v1364, 1.0
      %v1371 = vadd.f32 %v1366, 1.0
      %v1372 = vadd.f32 %v1368, 1.0
      %v1373 = vrcp.pop %v1369
      %v1374 = vmul.f32 %v1369, %v1373
      %v1375 = vsub.f32 1.0, %v1374
      %v1376 = vmul.f32 %v1373, %v1375
      %v1377 = vadd.f32 %v1373, %v1376
      %vm1378 = vweird.f32 %v1369
      %vm1379 = vweird.f32 %v1373
      %vm1380 = vmor %vm1378, %vm1379
      %v1381 = vsel %vm1380, %v1373, %v1377
      %v1382 = vand.u32 2147483647, %v1369
      %vm1383 = vcmp.eq.f32.partialorder %v1382, 8.507059e+37
      %v1384 = vand.u32 %v1369, 2147483648
      %v1385 = vor.u32 1.1754944e-38, %v1384
      %v1386 = vsel %vm1383, %v1385, %v1381
      %v1387 = vmul.f32 1.0, %v1386
      %v1388 = vrcp.pop %v1370
      %v1389 = vmul.f32 %v1370, %v1388
      %v1390 = vsub.f32 1.0, %v1389
      %v1391 = vmul.f32 %v1388, %v1390
      %v1392 = vadd.f32 %v1388, %v1391
      %vm1393 = vweird.f32 %v1370
      %vm1394 = vweird.f32 %v1388
      %vm1395 = vmor %vm1393, %vm1394
      %v1396 = vsel %vm1395, %v1388, %v1392
      %v1397 = vand.u32 2147483647, %v1370
      %vm1398 = vcmp.eq.f32.partialorder %v1397, 8.507059e+37
      %v1399 = vand.u32 %v1370, 2147483648
      %v1400 = vor.u32 1.1754944e-38, %v1399
      %v1401 = vsel %vm1398, %v1400, %v1396
      %v1402 = vmul.f32 1.0, %v1401
      %v1403 = vrcp.pop %v1371
      %v1404 = vmul.f32 %v1371, %v1403
      %v1405 = vsub.f32 1.0, %v1404
      %v1406 = vmul.f32 %v1403, %v1405
      %v1407 = vadd.f32 %v1403, %v1406
      %vm1408 = vweird.f32 %v1371
      %vm1409 = vweird.f32 %v1403
      %vm1410 = vmor %vm1408, %vm1409
      %v1411 = vsel %vm1410, %v1403, %v1407
      %v1412 = vand.u32 2147483647, %v1371
      %vm1413 = vcmp.eq.f32.partialorder %v1412, 8.507059e+37
      %v1414 = vand.u32 %v1371, 2147483648
      %v1415 = vor.u32 1.1754944e-38, %v1414
      %v1416 = vsel %vm1413, %v1415, %v1411
      %v1417 = vmul.f32 1.0, %v1416
      %v1418 = vrcp.pop %v1372
      %v1419 = vmul.f32 %v1372, %v1418
      %v1420 = vsub.f32 1.0, %v1419
      %v1421 = vmul.f32 %v1418, %v1420
      %v1422 = vadd.f32 %v1418, %v1421
      %vm1423 = vweird.f32 %v1372
      %vm1424 = vweird.f32 %v1418
      %vm1425 = vmor %vm1423, %vm1424
      %v1426 = vsel %vm1425, %v1418, %v1422
      %v1427 = vand.u32 2147483647, %v1372
      %vm1428 = vcmp.eq.f32.partialorder %v1427, 8.507059e+37
      %v1429 = vand.u32 %v1372, 2147483648
      %v1430 = vor.u32 1.1754944e-38, %v1429
      %v1431 = vsel %vm1428, %v1430, %v1426
      %v1432 = vmul.f32 1.0, %v1431
      %1433 = vst [vmem:[%s226] sm:$0xff] %v1387
      %1434 = vst [vmem:[%s226 + $0x8] sm:$0xff] %v1402
      %1435 = vst [vmem:[%s226 + $0x10] sm:$0xff] %v1417
      %1436 = vst [vmem:[%s226 + $0x18] sm:$0xff] %v1432
      %s1437 = smul.u32 4, %s16
      %p1438 = scmp.lt.s32.totalorder %s1437, 7
      %s1439 = scalar_select %p1438, %s1437, 7
      %s1440 = smul.addr %s1439, 8
      %s1441 = scalar_lea.vmem %s5, %s1440
      // Predicated region
      $region41: #{torch_model_forward.1} parent=39 // pred_check
        %p1442 = pneg %p144
      $region42: #{torch_model_forward.1} parent=39 // pred_check_branch
        %1444 = sbr.rel (%p1442) target = $region44
      $region43: #{torch_model_forward.1} parent=39 // pred_region
        %s1445 = smul.u32 4, %s16
      $region44: #{torch_model_forward.1} parent=39 // pred_fallthru
        _
    $region40: #{torch_model_forward.1} parent=5 // pred_fallthru
      _
    %p1446 = scmp.le.s32.totalorder 2, %s11
    // Predicated region
    $region45: #{torch_model_forward.1} parent=5 // pred_check
      %p1447 = pneg %p1446
    $region46: #{torch_model_forward.1} parent=5 // pred_check_branch
      %1449 = sbr.rel (%p1447) target = $region48
    $region47: #{torch_model_forward.1} parent=5 // pred_region
      %s1450 = ssub.s32 %s11, 2
      // Predicated region
      $region49: #{torch_model_forward.1} parent=47 // pred_check
        %p1451 = pneg %p150
      $region50: #{torch_model_forward.1} parent=47 // pred_check_branch
        %1453 = sbr.rel (%p1451) target = $region52
      $region51: #{torch_model_forward.1} parent=47 // pred_region
        %s1454 = smul.u32 4, %s17
        %p1455 = scmp.lt.s32.totalorder %s1454, 7
        %s1456 = scalar_select %p1455, %s1454, 7
        %s1457 = smul.addr %s1456, 8
        %s1458 = scalar_lea.vmem %s5, %s1457
      $region52: #{torch_model_forward.1} parent=47 // pred_fallthru
        _
    $region48: #{torch_model_forward.1} parent=5 // pred_fallthru
      _
  $region6: #{torch_model_forward.1} parent=0 // loop_footer
    %s15 = sadd.s32 1, %s11
  $region7: #{torch_model_forward.1} parent=0 // loop_footer_branch
    %10 = sbr.rel target = $region3
  $region8: #{torch_model_forward.1} parent=0 // loop_exit
    _

</llo_original>
